<compile_context>
chip_gen: v5e
topology: v5e:2x2
jax: 0.10.0
libtpu: 0.0.40
codegen_flags: <defaults>
</compile_context>

<pallas_src>
import functools
import math

import jax
import jax.numpy as jnp
import numpy as np
from jax import lax
from jax.experimental import pallas as pl
from jax.experimental.pallas import tpu as pltpu

_LANE = 128
_SUBLANE = 8
_MAX_BLOCK_ROWS = 8192          # (8192, 128) f32 tile = 4 MiB
_NSPLIT = 2                     # partial sums (megacore sharding on v7x)


def _cdiv(a, b):
    return -(-a // b)


def _round_up(a, b):
    return _cdiv(a, b) * b


def _vmem_limit(buffer_bytes):
    # Double-buffered working set + headroom; capped below v7x's 64 MiB VMEM.
    return int(min(max(buffer_bytes + (8 << 20), 32 << 20), 56 << 20))


def _qerror_block(p, t, use_unnorm, min_val, max_val):
    """Elementwise q-error on one f32 VMEM tile (compile-time unnormalize branch)."""
    if use_unnorm:
        # q = max(e^p', e^t') / min(e^p', e^t') = exp(|p' - t'|)
        #   = exp(|(p - t) * (max_val - min_val)|)
        # One exp per element, no divide, no overflow-to-NaN on large bounds.
        return jnp.exp(jnp.abs((p - t) * (max_val - min_val)))
    p = p + 1e-8
    t = t + 1e-8
    # Identical to where(p > t, p/t, t/p) but with a single divide.
    return jnp.maximum(p, t) / jnp.minimum(p, t)


def _qerror_raw_kernel(p_ref, t_ref, o_ref, *, use_unnorm, min_val, max_val):
    q = _qerror_block(p_ref[...].astype(jnp.float32),
                      t_ref[...].astype(jnp.float32),
                      use_unnorm, min_val, max_val)
    # Out-of-bounds rows of the last partial block are dropped by Pallas.
    o_ref[...] = q.astype(o_ref.dtype)


def _qerror_mean_kernel(p_ref, t_ref, o_ref, acc_ref, *,
                        use_unnorm, min_val, max_val,
                        steps, block_rows, full_blocks, n_valid):
    c = pl.program_id(0)
    i = pl.program_id(1)

    @pl.when(i == 0)
    def _():
        acc_ref[...] = jnp.zeros_like(acc_ref)

    q = _qerror_block(p_ref[...].astype(jnp.float32),
                      t_ref[...].astype(jnp.float32),
                      use_unnorm, min_val, max_val)

    blk = c * steps + i                    # logical block index (unclamped)
    block_elems = block_rows * _LANE

    def _fold(x):
        # Tile-aligned reshape (free) + cross-vreg VALU sum into one (8,128) vreg.
        return x.reshape(block_rows // _SUBLANE, _SUBLANE, _LANE).sum(axis=0)

    @pl.when(blk < full_blocks)
    def _():
        acc_ref[...] += _fold(q)

    @pl.when(blk >= full_blocks)
    def _():
        # Ragged tail: mask out-of-range slots (and any clamped duplicate
        # block) so they contribute exactly 0 -- no pad correction needed.
        row = lax.broadcasted_iota(jnp.int32, q.shape, 0)
        lane = lax.broadcasted_iota(jnp.int32, q.shape, 1)
        flat = row * _LANE + lane
        thresh = jnp.int32(n_valid) - blk * jnp.int32(block_elems)
        acc_ref[...] += _fold(jnp.where(flat < thresh, q, 0.0))

    @pl.when(i == steps - 1)
    def _():
        # One cross-lane reduce per split; broadcast so the (8,128) output
        # block is a full unmasked lane-dense store.
        o_ref[...] = jnp.broadcast_to(jnp.sum(acc_ref[...]), o_ref.shape)


def qerror(preds, targets, out="mean", min_val=None, max_val=None,
           max_block_rows=_MAX_BLOCK_ROWS):
    """JAX/Pallas equivalent of QError.forward."""
    assert preds.shape == targets.shape
    orig_shape = preds.shape
    orig_dtype = preds.dtype
    n = int(math.prod(orig_shape)) if orig_shape else 1

    # Faithful to the PyTorch truthiness check: min_val/max_val of 0.0 (or
    # None) disables unnormalization.
    use_unnorm = bool(min_val and max_val)
    mn = float(min_val) if use_unnorm else 0.0
    mx = float(max_val) if use_unnorm else 0.0

    max_block_rows = _round_up(max(int(max_block_rows), _SUBLANE), _SUBLANE)
    itemsize = np.dtype(orig_dtype).itemsize

    p = preds.reshape(-1)
    t = targets.reshape(-1)
    pad = (-n) % _LANE
    if pad:
        # Only lane-alignment padding (<= 127 elements); the common aligned
        # case does zero copies.  Pad value 1.0 gives q == 1 in every branch
        # (exp(0) == 1 with the |p-t| rewrite), though the in-kernel mask /
        # output slice makes the value irrelevant for correctness.
        p = jnp.pad(p, (0, pad), constant_values=1)
        t = jnp.pad(t, (0, pad), constant_values=1)
    rows = (n + pad) // _LANE
    p = p.reshape(rows, _LANE)
    t = t.reshape(rows, _LANE)

    block_rows = min(max_block_rows, _round_up(rows, _SUBLANE))
    block_elems = block_rows * _LANE
    num_blocks = _cdiv(rows, block_rows)

    if out == "raw":
        kern = functools.partial(_qerror_raw_kernel, use_unnorm=use_unnorm,
                                 min_val=mn, max_val=mx)
        vmem = _vmem_limit(3 * 2 * block_elems * itemsize)
        res = pl.pallas_call(
            kern,
            out_shape=jax.ShapeDtypeStruct((rows, _LANE), orig_dtype),
            grid=(num_blocks,),
            in_specs=[
                pl.BlockSpec((block_rows, _LANE), lambda i: (i, 0)),
                pl.BlockSpec((block_rows, _LANE), lambda i: (i, 0)),
            ],
            out_specs=pl.BlockSpec((block_rows, _LANE), lambda i: (i, 0)),
            compiler_params=pltpu.CompilerParams(
                dimension_semantics=("parallel",),
                vmem_limit_bytes=vmem),
        )(p, t)
        res = res.reshape(-1)
        if pad:
            res = res[:n]
        return res.reshape(orig_shape)

    if out != "mean":
        raise ValueError(f"unsupported out={out!r}")

    # Mean path.
    nsplit = _NSPLIT if num_blocks >= _NSPLIT else 1
    steps = _cdiv(num_blocks, nsplit)
    full_blocks = n // block_elems        # blocks with every element valid
    max_blk = num_blocks - 1

    def in_map(c, i):
        # Clamp so an odd block count never generates a fully out-of-bounds
        # DMA; the duplicate read is zero-masked inside the kernel.
        return (jnp.minimum(c * steps + i, max_blk), 0)

    kern = functools.partial(_qerror_mean_kernel, use_unnorm=use_unnorm,
                             min_val=mn, max_val=mx, steps=steps,
                             block_rows=block_rows, full_blocks=full_blocks,
                             n_valid=n)
    vmem = _vmem_limit(2 * 2 * block_elems * itemsize)
    partials = pl.pallas_call(
        kern,
        out_shape=jax.ShapeDtypeStruct((nsplit * _SUBLANE, _LANE), jnp.float32),
        grid=(nsplit, steps),
        in_specs=[
            pl.BlockSpec((block_rows, _LANE), in_map),
            pl.BlockSpec((block_rows, _LANE), in_map),
        ],
        out_specs=pl.BlockSpec((_SUBLANE, _LANE), lambda c, i: (c, 0)),
        scratch_shapes=[pltpu.VMEM((_SUBLANE, _LANE), jnp.float32)],
        compiler_params=pltpu.CompilerParams(
            dimension_semantics=("parallel", "arbitrary"),
            vmem_limit_bytes=vmem),
    )(p, t)
    # Each (8,128) output block is filled with its split's partial sum.
    split_sums = partials.reshape(nsplit, _SUBLANE, _LANE)[:, 0, 0]
    mean = jnp.sum(split_sums) / jnp.float32(n)
    return mean.astype(orig_dtype)


def _qerror_ref_np(preds, targets, out="mean", min_val=None, max_val=None):
    """Pure-numpy (float64) reference mirroring the PyTorch module."""
    p = np.asarray(preds, np.float64)
    t = np.asarray(targets, np.float64)
    if min_val and max_val:
        p = np.exp(p * (max_val - min_val) + min_val)
        t = np.exp(t * (max_val - min_val) + min_val)
    else:
        p = p + 1e-8
        t = t + 1e-8
    q = np.where(p > t, p / t, t / p)
    return q.mean() if out == "mean" else q


if __name__ == "__main__":
    key = jax.random.PRNGKey(0)
    k1, k2, k3, k4 = jax.random.split(key, 4)

    # Typical use: vectors of (normalized log-)cardinality estimates.
    preds = jax.random.uniform(k1, (2, 256), dtype=jnp.float32)
    targets = jax.random.uniform(k2, (2, 256), dtype=jnp.float32)

    # mean path (no unnormalize), lane-aligned -> zero-copy path.
    m = jax.block_until_ready(qerror(preds, targets, out="mean"))
    m_ref = _qerror_ref_np(np.asarray(preds), np.asarray(targets), out="mean")
    assert np.allclose(np.asarray(m), m_ref, rtol=1e-4, atol=1e-6), (m, m_ref)

    # raw path with unnormalize (min_val/max_val provided).
    r = jax.block_until_ready(
        qerror(preds, targets, out="raw", min_val=1.0, max_val=5.0))
    r_ref = _qerror_ref_np(np.asarray(preds), np.asarray(targets),
                           out="raw", min_val=1.0, max_val=5.0)
    assert r.shape == preds.shape
    assert np.allclose(np.asarray(r), r_ref, rtol=1e-4, atol=1e-6)

    # Ragged size (n % 128 != 0), multi-block, 2-way-split mean + raw paths,
    # with a tiny artificial block size to exercise masking and the clamped
    # duplicate block.
    p3 = jax.random.uniform(k3, (3, 1000), dtype=jnp.float32) + 0.1
    t3 = jax.random.uniform(k4, (3, 1000), dtype=jnp.float32) + 0.1
    m3 = jax.block_until_ready(qerror(p3, t3, out="mean", max_block_rows=8))
    m3_ref = _qerror_ref_np(np.asarray(p3), np.asarray(t3), out="mean")
    assert np.allclose(np.asarray(m3), m3_ref, rtol=1e-4, atol=1e-6), (m3, m3_ref)

    r3 = jax.block_until_ready(qerror(p3, t3, out="raw", max_block_rows=8))
    r3_ref = _qerror_ref_np(np.asarray(p3), np.asarray(t3), out="raw")
    assert r3.shape == p3.shape
    assert np.allclose(np.asarray(r3), r3_ref, rtol=1e-4, atol=1e-6)

    # Lane-aligned multi-block even-split mean (zero-copy, no masking needed).
    p4 = jax.random.uniform(k1, (16, 128), dtype=jnp.float32) + 0.05
    t4 = jax.random.uniform(k2, (16, 128), dtype=jnp.float32) + 0.05
    m4 = jax.block_until_ready(qerror(p4, t4, out="mean", max_block_rows=8))
    m4_ref = _qerror_ref_np(np.asarray(p4), np.asarray(t4), out="mean")
    assert np.allclose(np.asarray(m4), m4_ref, rtol=1e-4, atol=1e-6), (m4, m4_ref)

    print("KERNEL_OK")
</pallas_src>

<mosaic_0001>
module attributes {stable_mosaic.version = 11 : i64} {
  func.func @_qerror_mean_kernel(%arg0: i32, %arg1: i32, %arg2: memref<8x128xf32, #tpu.memory_space<vmem>>, %arg3: memref<8x128xf32, #tpu.memory_space<vmem>>, %arg4: memref<8x128xf32, #tpu.memory_space<vmem>>, %arg5: memref<8x128xf32, #tpu.memory_space<vmem>>) attributes {dimension_semantics = [#tpu.dimension_semantics<parallel>, #tpu.dimension_semantics<arbitrary>], iteration_bounds = array<i64: 1, 1>, scalar_prefetch = 0 : i64, scratch_operands = 1 : i64, tpu.core_type = #tpu.core_type<tc>, window_params = [{transform_indices = @transform_0, window_bounds = array<i64: 8, 128>}, {transform_indices = @transform_1, window_bounds = array<i64: 8, 128>}, {transform_indices = @transform_2, window_bounds = array<i64: 8, 128>}]} {
    %c0_i32 = arith.constant 0 : i32
    %0 = arith.cmpi eq, %arg1, %c0_i32 : i32
    %1 = arith.extui %0 : i1 to i32
    %c0_i32_0 = arith.constant 0 : i32
    %2 = arith.cmpi ne, %1, %c0_i32_0 : i32
    scf.if %2 {
      %cst_11 = arith.constant 0.000000e+00 : f32
      %23 = vector.broadcast %cst_11 : f32 to vector<8x128xf32>
      %c0_12 = arith.constant 0 : index
      %c0_13 = arith.constant 0 : index
      %24 = vector.load %arg5[%c0_12, %c0_13] : memref<8x128xf32, #tpu.memory_space<vmem>>, vector<8x128xf32>
      tpu.vector_store %arg5[%c0_12, %c0_13], %23 {strides = array<i32>} : memref<8x128xf32, #tpu.memory_space<vmem>>, vector<8x128xf32>,
    } else {
    }
    %c0 = arith.constant 0 : index
    %c0_1 = arith.constant 0 : index
    %3 = vector.load %arg2[%c0, %c0_1] : memref<8x128xf32, #tpu.memory_space<vmem>>, vector<8x128xf32>
    %c0_2 = arith.constant 0 : index
    %c0_3 = arith.constant 0 : index
    %4 = vector.load %arg3[%c0_2, %c0_3] : memref<8x128xf32, #tpu.memory_space<vmem>>, vector<8x128xf32>
    %cst = arith.constant 9.99999993E-9 : f32
    %5 = vector.broadcast %cst : f32 to vector<8x128xf32>
    %6 = arith.addf %3, %5 : vector<8x128xf32>
    %cst_4 = arith.constant 9.99999993E-9 : f32
    %7 = vector.broadcast %cst_4 : f32 to vector<8x128xf32>
    %8 = arith.addf %4, %7 : vector<8x128xf32>
    %9 = arith.maximumf %6, %8 : vector<8x128xf32>
    %10 = arith.minimumf %6, %8 : vector<8x128xf32>
    %11 = arith.divf %9, %10 : vector<8x128xf32>
    %c1_i32 = arith.constant 1 : i32
    %12 = arith.muli %arg0, %c1_i32 : i32
    %13 = arith.addi %12, %arg1 : i32
    %c0_i32_5 = arith.constant 0 : i32
    %14 = arith.cmpi slt, %13, %c0_i32_5 : i32
    %15 = arith.extui %14 : i1 to i32
    %c0_i32_6 = arith.constant 0 : i32
    %16 = arith.cmpi ne, %15, %c0_i32_6 : i32
    scf.if %16 {
      %c0_11 = arith.constant 0 : index
      %c0_12 = arith.constant 0 : index
      %23 = vector.load %arg5[%c0_11, %c0_12] : memref<8x128xf32, #tpu.memory_space<vmem>>, vector<8x128xf32>
      %24 = vector.shape_cast %11 : vector<8x128xf32> to vector<1x8x128xf32>
      %cst_13 = arith.constant dense<0.000000e+00> : vector<8x128xf32>
      %25 = vector.multi_reduction <add>, %24, %cst_13 [0] : vector<1x8x128xf32> to vector<8x128xf32>
      %26 = arith.addf %23, %25 : vector<8x128xf32>
      %c0_14 = arith.constant 0 : index
      %c0_15 = arith.constant 0 : index
      %27 = vector.load %arg5[%c0_14, %c0_15] : memref<8x128xf32, #tpu.memory_space<vmem>>, vector<8x128xf32>
      tpu.vector_store %arg5[%c0_14, %c0_15], %26 {strides = array<i32>} : memref<8x128xf32, #tpu.memory_space<vmem>>, vector<8x128xf32>,
    } else {
    }
    %c0_i32_7 = arith.constant 0 : i32
    %17 = arith.cmpi sge, %13, %c0_i32_7 : i32
    %18 = arith.extui %17 : i1 to i32
    %c0_i32_8 = arith.constant 0 : i32
    %19 = arith.cmpi ne, %18, %c0_i32_8 : i32
    scf.if %19 {
      %23 = tpu.iota {dimensions = array<i32: 0>} : vector<8x128xi32>
      %24 = tpu.iota {dimensions = array<i32: 1>} : vector<8x128xi32>
      %c128_i32 = arith.constant 128 : i32
      %25 = vector.broadcast %c128_i32 : i32 to vector<8x128xi32>
      %26 = arith.muli %23, %25 : vector<8x128xi32>
      %27 = arith.addi %26, %24 : vector<8x128xi32>
      %c1024_i32 = arith.constant 1024 : i32
      %28 = arith.muli %13, %c1024_i32 : i32
      %c512_i32 = arith.constant 512 : i32
      %29 = arith.subi %c512_i32, %28 : i32
      %c0_11 = arith.constant 0 : index
      %c0_12 = arith.constant 0 : index
      %30 = vector.load %arg5[%c0_11, %c0_12] : memref<8x128xf32, #tpu.memory_space<vmem>>, vector<8x128xf32>
      %31 = vector.broadcast %29 : i32 to vector<8x128xi32>
      %32 = arith.cmpi slt, %27, %31 : vector<8x128xi32>
      %cst_13 = arith.constant 0.000000e+00 : f32
      %33 = vector.broadcast %cst_13 : f32 to vector<8x128xf32>
      %34 = arith.select %32, %11, %33 : vector<8x128xi1>, vector<8x128xf32>
      %35 = vector.shape_cast %34 : vector<8x128xf32> to vector<1x8x128xf32>
      %cst_14 = arith.constant dense<0.000000e+00> : vector<8x128xf32>
      %36 = vector.multi_reduction <add>, %35, %cst_14 [0] : vector<1x8x128xf32> to vector<8x128xf32>
      %37 = arith.addf %30, %36 : vector<8x128xf32>
      %c0_15 = arith.constant 0 : index
      %c0_16 = arith.constant 0 : index
      %38 = vector.load %arg5[%c0_15, %c0_16] : memref<8x128xf32, #tpu.memory_space<vmem>>, vector<8x128xf32>
      tpu.vector_store %arg5[%c0_15, %c0_16], %37 {strides = array<i32>} : memref<8x128xf32, #tpu.memory_space<vmem>>, vector<8x128xf32>,
    } else {
    }
    %c0_i32_9 = arith.constant 0 : i32
    %20 = arith.cmpi eq, %arg1, %c0_i32_9 : i32
    %21 = arith.extui %20 : i1 to i32
    %c0_i32_10 = arith.constant 0 : i32
    %22 = arith.cmpi ne, %21, %c0_i32_10 : i32
    scf.if %22 {
      %c0_11 = arith.constant 0 : index
      %c0_12 = arith.constant 0 : index
      %23 = vector.load %arg5[%c0_11, %c0_12] : memref<8x128xf32, #tpu.memory_space<vmem>>, vector<8x128xf32>
      %24 = vector.shape_cast %23 : vector<8x128xf32> to vector<1x8x128xf32>
      %cst_13 = arith.constant dense<0.000000e+00> : vector<1xf32>
      %25 = vector.multi_reduction <add>, %24, %cst_13 [1, 2] : vector<1x8x128xf32> to vector<1xf32>
      %26 = vector.shape_cast %25 : vector<1xf32> to vector<1x1x1xf32>
      %27 = vector.extract %26[0, 0, 0] : f32 from vector<1x1x1xf32>
      %28 = vector.broadcast %27 : f32 to vector<8x128xf32>
      %c0_14 = arith.constant 0 : index
      %c0_15 = arith.constant 0 : index
      %29 = vector.load %arg4[%c0_14, %c0_15] : memref<8x128xf32, #tpu.memory_space<vmem>>, vector<8x128xf32>
      tpu.vector_store %arg4[%c0_14, %c0_15], %28 {strides = array<i32>} : memref<8x128xf32, #tpu.memory_space<vmem>>, vector<8x128xf32>,
    } else {
    }
    return
  }
  func.func @transform_0(%arg0: i32, %arg1: i32) -> (i32, i32) {
    %c1_i32 = arith.constant 1 : i32
    %0 = arith.muli %arg0, %c1_i32 : i32
    %1 = arith.addi %0, %arg1 : i32
    %c0_i32 = arith.constant 0 : i32
    %2 = arith.minsi %1, %c0_i32 : i32
    %c0_i32_0 = arith.constant 0 : i32
    %c0_i32_1 = arith.constant 0 : i32
    return %2, %c0_i32_0 : i32, i32
  }
  func.func @transform_1(%arg0: i32, %arg1: i32) -> (i32, i32) {
    %c1_i32 = arith.constant 1 : i32
    %0 = arith.muli %arg0, %c1_i32 : i32
    %1 = arith.addi %0, %arg1 : i32
    %c0_i32 = arith.constant 0 : i32
    %2 = arith.minsi %1, %c0_i32 : i32
    %c0_i32_0 = arith.constant 0 : i32
    %c0_i32_1 = arith.constant 0 : i32
    return %2, %c0_i32_0 : i32, i32
  }
  func.func @transform_2(%arg0: i32, %arg1: i32) -> (i32, i32) {
    %c0_i32 = arith.constant 0 : i32
    %c0_i32_0 = arith.constant 0 : i32
    return %arg0, %c0_i32 : i32, i32
  }
}

</mosaic_0001>

<llo_original>
// kernel: tpu_custom_call.1
$region0: #{tpu_custom_call.1}
  #allocation0 [shape = 'u32[]', space=smem, size = 0x4, offset = 0x4, fixed_abs, tag = 'smem constant byte address 0x4 - core index']
  #allocation1 [shape = 'u32[72,128]{1,0:T(1,128)}', space=vmem, size = 0x9000, scoped, tag = 'internal scratch']
  #allocation2 [shape = 'f32[8,128]{1,0:T(8,128)}', space=vmem, size = 0x1000, scoped, tag = 'scratch operand']
  %s0 = inlined_call_operand.hbm [shape: f32[4,128], index: 0, kind: input, shape index: {}]
  %s1 = inlined_call_operand.hbm [shape: f32[4,128], index: 1, kind: input, shape index: {}]
  %s2 = inlined_call_operand.hbm [shape: f32[8,128], index: 2, kind: output, shape index: {}]
  %s3 = sld [smem:[#allocation0]]
  $region42: #{tpu_custom_call.1} parent=0
    _
  %s5 = ssub.s32 1, %s3
  %s6 = scalar_select 0, %s5, %s3
  $region1: #{tpu_custom_call.1} parent=0
    #allocation3 [shape = 'u8[4096]{0}', space=vmem, size = 0x1000, scoped, tag = 'input window, operand 0, single buffered']
    #allocation4 [shape = 's32[1]{0}', space=sflag, size = 0x4, scoped, tag = 'scoped memory for tpu_custom_call.1']
    #allocation5 [shape = 's32[1]{0}', space=sflag, size = 0x4, scoped, tag = 'scoped memory for tpu_custom_call.1']
    #allocation6 [shape = 'u8[4096]{0}', space=vmem, size = 0x1000, scoped, tag = 'input window, operand 1, single buffered']
    #allocation7 [shape = 's32[1]{0}', space=sflag, size = 0x4, scoped, tag = 'scoped memory for tpu_custom_call.1']
    #allocation8 [shape = 'u8[4096]{0}', space=vmem, size = 0x1000, scoped, tag = 'output window, operand 0, single buffered']
    %7 = vsyncpa [#allocation4], 0
    %8 = vsyncpa [#allocation7], 0
    %9 = vsyncpa [#allocation5], 0
    // Predicated region
    $region2: #{tpu_custom_call.1} parent=1 // pred_check
      _
    $region3: #{tpu_custom_call.1} parent=1 // pred_check_branch
      %11 = sbr.rel (0) target = $region5
    $region4: #{tpu_custom_call.1} parent=1 // pred_region
      %s12 = sadd.s32 0, 0
      %p13 = scmp.lt.s32.totalorder %s12, 0
      %s14 = scalar_select %p13, %s12, 0
      %s15 = smul.u32 2, %s14
      %s16 = ssub.s32 1, %s15
      %s17 = smul.u32 4, %s16
      %s18 = ssub.s32 8, %s17
      %s19 = sshll.u32 %s18, 4
      %20 = vsyncadd [#allocation4], %s19
      %p21 = scmp.ne.s32.totalorder 0, %s17
      %s22 = smul.addr %s15, 4
      %s23 = scalar_lea.hbm %s0, %s22
      %s24 = smul.u32 4, %s16
      %s25 = sshll.u32 %s23, 4
      %s26 = int_to_ptr.hbm [resolvable:$true] %s25
      %s27 = sshll.u32 [#allocation3], 4
      %s28 = int_to_ptr.vmem [resolvable:$true] %s27
      %s29 = sshll.u32 %s24, 4
      %33 = dma.hbm_to_vmem [thread:$0]  (%p21), %s26, %s29, %s28, [#allocation4], 64, 64, 4
    $region5: #{tpu_custom_call.1} parent=1 // pred_fallthru
      _
    // Predicated region
    $region6: #{tpu_custom_call.1} parent=1 // pred_check
      _
    $region7: #{tpu_custom_call.1} parent=1 // pred_check_branch
      %35 = sbr.rel (0) target = $region9
    $region8: #{tpu_custom_call.1} parent=1 // pred_region
      %s36 = sadd.s32 0, 0
      %p37 = scmp.lt.s32.totalorder %s36, 0
      %s38 = scalar_select %p37, %s36, 0
      %s39 = smul.u32 2, %s38
      %s40 = ssub.s32 1, %s39
      %s41 = smul.u32 4, %s40
      %s42 = ssub.s32 8, %s41
      %s43 = sshll.u32 %s42, 4
      %44 = vsyncadd [#allocation7], %s43
      %p45 = scmp.ne.s32.totalorder 0, %s41
      %s46 = smul.addr %s39, 4
      %s47 = scalar_lea.hbm %s1, %s46
      %s48 = smul.u32 4, %s40
      %s49 = sshll.u32 %s47, 4
      %s50 = int_to_ptr.hbm [resolvable:$true] %s49
      %s51 = sshll.u32 [#allocation6], 4
      %s52 = int_to_ptr.vmem [resolvable:$true] %s51
      %s53 = sshll.u32 %s48, 4
      %57 = dma.hbm_to_vmem [thread:$0]  (%p45), %s50, %s53, %s52, [#allocation7], 64, 64, 4
    $region9: #{tpu_custom_call.1} parent=1 // pred_fallthru
      _
    // Predicated region
    $region10: #{tpu_custom_call.1} parent=1 // pred_check
      _
    $region11: #{tpu_custom_call.1} parent=1 // pred_check_branch
      %59 = sbr.rel (0) target = $region13
    $region12: #{tpu_custom_call.1} parent=1 // pred_region
      %61 = dma.done [#allocation4], 128
    $region13: #{tpu_custom_call.1} parent=1 // pred_fallthru
      _
    // Predicated region
    $region14: #{tpu_custom_call.1} parent=1 // pred_check
      _
    $region15: #{tpu_custom_call.1} parent=1 // pred_check_branch
      %63 = sbr.rel (0) target = $region17
    $region16: #{tpu_custom_call.1} parent=1 // pred_region
      %65 = dma.done [#allocation7], 128
    $region17: #{tpu_custom_call.1} parent=1 // pred_fallthru
      _
    %s66 = sadd.s32 0, 0
    %p67 = scmp.lt.s32.totalorder %s66, 0
    %s68 = scalar_select %p67, %s66, 0
    %s69 = smul.u32 2, %s68
    %s70 = ssub.s32 1, %s69
    %s71 = smul.u32 4, %s70
    %s72 = sadd.s32 0, 0
    %p73 = scmp.lt.s32.totalorder %s72, 0
    %s74 = scalar_select %p73, %s72, 0
    %s75 = smul.u32 2, %s74
    %s76 = ssub.s32 1, %s75
    %s77 = smul.u32 4, %s76
    %p78 = scmp.eq.s32.totalorder 0, 0
    // Predicated region
    $region18: #{tpu_custom_call.1} parent=1 // pred_check
      %p79 = pneg %p78
    $region19: #{tpu_custom_call.1} parent=1 // pred_check_branch
      %81 = sbr.rel (%p79) target = $region21
    $region20: #{tpu_custom_call.1} parent=1 // pred_region
      %82 = vst [vmem:[#allocation2] sm:$0xff] 0.0
    $region21: #{tpu_custom_call.1} parent=1 // pred_fallthru
      _
    %v83 = vld [vmem:[#allocation3] sm:$0xff]
    %v84 = vld [vmem:[#allocation6] sm:$0xff]
    %v85 = vadd.f32 %v83, 1e-08
    %v86 = vadd.f32 %v84, 1e-08
    %v87 = vmax.f32 %v85, %v86
    %v88 = vmin.f32 %v85, %v86
    %v89 = vrcp.pop %v88
    %v90 = vmul.f32 %v88, %v89
    %v91 = vsub.f32 1.0, %v90
    %v92 = vmul.f32 %v89, %v91
    %v93 = vadd.f32 %v89, %v92
    %vm94 = vweird.f32 %v88
    %vm95 = vweird.f32 %v89
    %vm96 = vmor %vm94, %vm95
    %v97 = vsel %vm96, %v89, %v93
    %v98 = vand.u32 2147483647, %v88
    %vm99 = vcmp.eq.f32.partialorder %v98, 8.507059e+37
    %v100 = vand.u32 %v88, 2147483648
    %v101 = vor.u32 1.1754944e-38, %v100
    %v102 = vsel %vm99, %v101, %v97
    %v103 = vmul.f32 %v87, %v102
    %s104 = sadd.s32 0, 0
    %p105 = scmp.lt.s32.totalorder %s104, 0
    // Predicated region
    $region22: #{tpu_custom_call.1} parent=1 // pred_check
      %p106 = pneg %p105
    $region23: #{tpu_custom_call.1} parent=1 // pred_check_branch
      %108 = sbr.rel (%p106) target = $region25
    $region24: #{tpu_custom_call.1} parent=1 // pred_region
      %v109 = vld [vmem:[#allocation2] sm:$0xff]
      %v110 = vadd.f32 %v103, 0.0
      %v111 = vadd.f32 %v109, %v110
      %112 = vst [vmem:[#allocation2] sm:$0xff] %v111
    $region25: #{tpu_custom_call.1} parent=1 // pred_fallthru
      _
    %p113 = scmp.ge.s32.totalorder %s104, 0
    // Predicated region
    $region26: #{tpu_custom_call.1} parent=1 // pred_check
      %p114 = pneg %p113
    $region27: #{tpu_custom_call.1} parent=1 // pred_check_branch
      %116 = sbr.rel (%p114) target = $region29
    $region28: #{tpu_custom_call.1} parent=1 // pred_region
      %v117 = vlaneseq
      %v118 = vshrl.u32 %v117, 7
      %v119 = vlaneseq
      %v120 = vand.u32 %v119, 127
      %v121 = vmul.u32 %v118, 128
      %v122 = vadd.s32 %v121, %v120
      %s123 = smul.u32 %s104, 1024
      %s124 = ssub.s32 512, %s123
      %v125 = vld [vmem:[#allocation2] sm:$0xff]
      %v126 = vstv %s124
      %vm127 = vcmp.lt.s32.totalorder %v122, %v126
      %v128 = vsel %vm127, %v103, 0.0
      %v129 = vadd.f32 %v128, 0.0
      %v130 = vadd.f32 %v125, %v129
      %131 = vst [vmem:[#allocation2] sm:$0xff] %v130
    $region29: #{tpu_custom_call.1} parent=1 // pred_fallthru
      _
    // Predicated region
    $region30: #{tpu_custom_call.1} parent=1 // pred_check
      %p132 = pneg %p78
    $region31: #{tpu_custom_call.1} parent=1 // pred_check_branch
      %134 = sbr.rel (%p132) target = $region33
    $region32: #{tpu_custom_call.1} parent=1 // pred_region
      %v135 = vld [vmem:[#allocation2] sm:$0xff]
      %136 = vadd.xlane.f32.xlu0 %v135
      %v137 = vpop.xlane.xlu0 %136
      %v138 = vrot.slane %v137, 4
      %v139 = vadd.f32 %v137, %v138
      %v140 = vrot.slane %v139, 2
      %v141 = vadd.f32 %v139, %v140
      %v142 = vrot.slane %v141, 1
      %v143 = vadd.f32 %v141, %v142
      %s144 = vtos %v143
      %v145 = vstv %s144
      %146 = vst [vmem:[#allocation8] sm:$0xff] %v145
    $region33: #{tpu_custom_call.1} parent=1 // pred_fallthru
      _
    // Predicated region
    $region34: #{tpu_custom_call.1} parent=1 // pred_check
      _
    $region35: #{tpu_custom_call.1} parent=1 // pred_check_branch
      %148 = sbr.rel (0) target = $region37
    $region36: #{tpu_custom_call.1} parent=1 // pred_region
      %150 = vsyncadd [#allocation5], 0
      %s152 = sshll.u32 [#allocation8], 4
      %s153 = int_to_ptr.vmem [resolvable:$true] %s152
      %s154 = sshll.u32 %s2, 4
      %s155 = int_to_ptr.hbm [resolvable:$true] %s154
      %157 = dma.vmem_to_hbm [thread:$0]  %s153, 128, %s155, [#allocation5]
    $region37: #{tpu_custom_call.1} parent=1 // pred_fallthru
      _
    // Predicated region
    $region38: #{tpu_custom_call.1} parent=1 // pred_check
      _
    $region39: #{tpu_custom_call.1} parent=1 // pred_check_branch
      %159 = sbr.rel (0) target = $region41
    $region40: #{tpu_custom_call.1} parent=1 // pred_region
      %161 = dma.done [#allocation5], 128
    $region41: #{tpu_custom_call.1} parent=1 // pred_fallthru
      _
    %162 = vsyncpa [#allocation4], 1
    %163 = vsyncpa [#allocation7], 1
    %164 = vsyncpa [#allocation5], 1

</llo_original>
